<compile_context>
chip_gen: v7x
topology: tpu7x:2x2x1
jax: 0.10.0
libtpu: 0.0.40
codegen_flags: <defaults>
</compile_context>

<pallas_src>
import functools

import jax
import jax.numpy as jnp
from jax.experimental import pallas as pl
from jax.experimental.pallas import tpu as pltpu

LANE = 128
TARGET_BLOCK_BYTES = 4 * 1024 * 1024   # per-input, per-buffer VMEM tile target
_CORE_SPLIT = 2                        # v7x has 2 TensorCores; harmless on v5e/v6e


def _int_pow(x, p):
    """x**p via repeated multiplication (p >= 1, integer)."""
    y = x
    for _ in range(p - 1):
        y = y * x
    return y


def _dice_kernel(pred_ref, targ_ref, num_ref, den_ref, *, p_exp, rows, tile_rows,
                 tiles_per_core, num_tiles, acc_rows, need_row_mask,
                 need_tile_guard):
    c = pl.program_id(0)        # TensorCore-split axis ("parallel")
    t = pl.program_id(1)        # per-core row-tile axis ("arbitrary", sequential)

    @pl.when(t == 0)
    def _init():
        num_ref[...] = jnp.zeros_like(num_ref)
        den_ref[...] = jnp.zeros_like(den_ref)

    g = c * tiles_per_core + t  # global row-tile index

    def _accumulate():
        pr = pred_ref[...].astype(jnp.float32)
        tg = targ_ref[...].astype(jnp.float32)

        prod = pr * tg
        # Integer powers via repeated multiplies (no EUP pow chain).
        if p_exp == 1:
            den_t = pr + tg
        elif p_exp == 2:
            den_t = pr * pr + tg * tg
        else:
            prp, tgp = pr, tg
            for _ in range(p_exp - 1):
                prp = prp * pr
                tgp = tgp * tg
            den_t = prp + tgp

        if need_row_mask:
            # Only compiled in when the last tile is ragged: mask garbage rows
            # of the Pallas-padded edge block (2 selects total).
            row_ids = g * tile_rows + jax.lax.broadcasted_iota(
                jnp.int32, prod.shape, 0)
            valid = row_ids < rows
            prod = jnp.where(valid, prod, 0.0)
            den_t = jnp.where(valid, den_t, 0.0)

        if acc_rows == 8:
            # (tile_rows,128) -> (tile_rows//8, 8, 128) is layout-preserving;
            # the axis-0 sum is VPU-only (no cross-lane XLU work per tile).
            part_num = prod.reshape(tile_rows // 8, 8, LANE).sum(axis=0)
            part_den = den_t.reshape(tile_rows // 8, 8, LANE).sum(axis=0)
        else:
            # Single-tile fallback when rows is not a multiple of 8.
            part_num = jnp.sum(prod, axis=0, keepdims=True)
            part_den = jnp.sum(den_t, axis=0, keepdims=True)

        # Resident output blocks act as the per-core accumulators.
        num_ref[...] += part_num
        den_ref[...] += part_den

    if need_tile_guard:
        # Skip duplicate tiles created by rounding tiles up to the core split.
        pl.when(g < num_tiles)(_accumulate)
    else:
        _accumulate()


def binary_dice_loss(predict, target, smooth=1.0, p=1,
                     block_bytes=TARGET_BLOCK_BYTES):
    """Pallas implementation of BinaryDiceLoss.forward (whole-batch dice)."""
    assert predict.shape[0] == target.shape[0], \
        "predict & target batch size do not match"
    p = int(p)
    assert p >= 1, "p must be a positive integer"

    pf = predict.reshape(-1)
    tf = target.reshape(-1)
    assert pf.shape[0] == tf.shape[0], \
        "predict & target must have the same number of elements"
    n = pf.shape[0]

    n_main = (n // LANE) * LANE
    rows = n_main // LANE

    # <128-element tail handled with plain jnp (avoids a full-array pad copy).
    num_tail = jnp.float32(0.0)
    den_tail = jnp.float32(0.0)
    if n_main < n:
        pt = pf[n_main:].astype(jnp.float32)
        tt = tf[n_main:].astype(jnp.float32)
        num_tail = jnp.sum(pt * tt)
        den_tail = jnp.sum(_int_pow(pt, p) + _int_pow(tt, p))

    if rows == 0:
        num = 2.0 * num_tail + smooth
        den = den_tail + smooth
        return jnp.float32(1.0) - num / den

    if n_main == n:
        pm, tm = pf, tf                      # aligned: zero extra copies
    else:
        pm, tm = pf[:n_main], tf[:n_main]    # aligned prefix for the kernel
    pm = pm.reshape(rows, LANE)
    tm = tm.reshape(rows, LANE)

    # ---- byte-targeted tile selection (multiple of 32 rows) -----------------
    itemsize = max(pm.dtype.itemsize, tm.dtype.itemsize)
    target_rows = max(32, (int(block_bytes) // (LANE * itemsize)) // 32 * 32)

    if rows <= target_rows:
        tile_rows = rows                     # single full-extent block
    else:
        tile_rows = target_rows
        # Prefer a 32-multiple that divides rows evenly (no ragged-tile mask),
        # searching only down to half the target so blocks stay 2-4 MiB.
        for cand in range(target_rows, max(32, target_rows // 2) - 1, -32):
            if rows % cand == 0:
                tile_rows = cand
                break

    num_tiles = pl.cdiv(rows, tile_rows)
    ncs = min(_CORE_SPLIT, num_tiles)        # TensorCore split (v7x ~2x)
    tiles_per_core = pl.cdiv(num_tiles, ncs)
    acc_rows = 8 if tile_rows % 8 == 0 else 1
    need_row_mask = (rows % tile_rows) != 0
    need_tile_guard = (ncs * tiles_per_core) != num_tiles

    if need_tile_guard:
        def in_map(c, t):
            # Clamp so the duplicated trailing tile's DMA stays in-bounds; its
            # contribution is skipped by the in-kernel pl.when guard.
            return (jnp.minimum(c * tiles_per_core + t, num_tiles - 1), 0)
    else:
        def in_map(c, t):
            return (c * tiles_per_core + t, 0)

    out_map = lambda c, t: (c, 0, 0)

    kernel = functools.partial(
        _dice_kernel, p_exp=p, rows=rows, tile_rows=tile_rows,
        tiles_per_core=tiles_per_core, num_tiles=num_tiles, acc_rows=acc_rows,
        need_row_mask=need_row_mask, need_tile_guard=need_tile_guard)

    # Raise scoped VMEM (v5e default is 16 MiB) to fit 2 inputs x 2 buffers of
    # the chosen tiles; default config needs ~16 MiB resident -> 32 MiB limit.
    resident_bytes = 2 * tile_rows * LANE * (pm.dtype.itemsize + tm.dtype.itemsize)
    vmem_limit = int(max(32 * 1024 * 1024, resident_bytes + (8 << 20)))

    n_elems = rows * LANE
    cost = pl.CostEstimate(
        flops=n_elems * (4 + 2 * (p - 1)),
        transcendentals=0,
        bytes_accessed=n_elems * (pm.dtype.itemsize + tm.dtype.itemsize)
        + 2 * ncs * acc_rows * LANE * 4)

    out_num, out_den = pl.pallas_call(
        kernel,
        out_shape=(jax.ShapeDtypeStruct((ncs, acc_rows, LANE), jnp.float32),
                   jax.ShapeDtypeStruct((ncs, acc_rows, LANE), jnp.float32)),
        grid=(ncs, tiles_per_core),
        in_specs=[
            pl.BlockSpec((tile_rows, LANE), in_map),
            pl.BlockSpec((tile_rows, LANE), in_map),
        ],
        out_specs=(
            pl.BlockSpec((None, acc_rows, LANE), out_map),
            pl.BlockSpec((None, acc_rows, LANE), out_map),
        ),
        compiler_params=pltpu.CompilerParams(
            dimension_semantics=("parallel", "arbitrary"),
            vmem_limit_bytes=vmem_limit),
        cost_estimate=cost,
    )(pm, tm)

    # Combine per-core partials + tail and finish in the wrapper (scalar XLA ops).
    num_main = jnp.sum(out_num)
    den_main = jnp.sum(out_den)
    num = 2.0 * (num_main + num_tail) + smooth
    den = (den_main + den_tail) + smooth
    return jnp.float32(1.0) - num / den


def _reference(predict, target, smooth=1.0, p=1):
    pf = predict.reshape(-1).astype(jnp.float32)
    tf = target.reshape(-1).astype(jnp.float32)
    num = 2.0 * jnp.sum(pf * tf) + smooth
    den = jnp.sum(pf ** p + tf ** p) + smooth
    return 1.0 - num / den


if __name__ == "__main__":
    key = jax.random.PRNGKey(0)

    # 1) Base case: NCHW [2, 4, 16, 16] f32 (lane-aligned, single tile), p=1.
    k1, k2, key = jax.random.split(key, 3)
    predict = jax.nn.sigmoid(jax.random.normal(k1, (2, 4, 16, 16), jnp.float32))
    target = (jax.random.uniform(k2, (2, 4, 16, 16)) > 0.5).astype(jnp.float32)
    loss = jax.block_until_ready(binary_dice_loss(predict, target, smooth=1.0, p=1))
    ref = _reference(predict, target, smooth=1.0, p=1)
    assert jnp.allclose(loss, ref, rtol=1e-5, atol=1e-5), (loss, ref)

    # 2) Multi-tile + two-core-split path (forced small blocks so the grid path
    #    is exercised at small shapes); even divisor found, tile guard active, p=2.
    k1, k2, key = jax.random.split(key, 3)
    predict2 = jax.nn.sigmoid(jax.random.normal(k1, (2, 4, 192, 200), jnp.float32))
    target2 = (jax.random.uniform(k2, (2, 4, 192, 200)) > 0.5).astype(jnp.float32)
    loss2 = jax.block_until_ready(
        binary_dice_loss(predict2, target2, smooth=1.0, p=2, block_bytes=64 * 1024))
    ref2 = _reference(predict2, target2, smooth=1.0, p=2)
    assert jnp.allclose(loss2, ref2, rtol=1e-5, atol=1e-5), (loss2, ref2)

    # 3) Ragged last tile (rows=1009 is prime -> no divisor -> in-kernel row mask), p=3.
    k1, k2, key = jax.random.split(key, 3)
    predict3 = jax.nn.sigmoid(jax.random.normal(k1, (1, 1009, 128), jnp.float32))
    target3 = (jax.random.uniform(k2, (1, 1009, 128)) > 0.5).astype(jnp.float32)
    loss3 = jax.block_until_ready(
        binary_dice_loss(predict3, target3, smooth=1.0, p=3, block_bytes=64 * 1024))
    ref3 = _reference(predict3, target3, smooth=1.0, p=3)
    assert jnp.allclose(loss3, ref3, rtol=1e-5, atol=1e-5), (loss3, ref3)

    # 4) Non-multiple-of-128 flat size (jnp tail path, no pad copy) + bf16 inputs.
    k1, k2, key = jax.random.split(key, 3)
    predict4 = jax.nn.sigmoid(
        jax.random.normal(k1, (2, 3, 15, 17), jnp.float32)).astype(jnp.bfloat16)
    target4 = (jax.random.uniform(k2, (2, 3, 15, 17)) > 0.5).astype(jnp.bfloat16)
    loss4 = jax.block_until_ready(binary_dice_loss(predict4, target4, smooth=1.0, p=1))
    ref4 = _reference(predict4, target4, smooth=1.0, p=1)
    assert jnp.allclose(loss4, ref4, rtol=1e-4, atol=1e-4), (loss4, ref4)

    print("KERNEL_OK")
</pallas_src>

<mosaic_0001>
module attributes {stable_mosaic.version = 11 : i64} {
  func.func @_dice_kernel(%arg0: i32, %arg1: i32, %arg2: memref<16x128xf32, #tpu.memory_space<vmem>>, %arg3: memref<16x128xf32, #tpu.memory_space<vmem>>, %arg4: memref<1x8x128xf32, #tpu.memory_space<vmem>>, %arg5: memref<1x8x128xf32, #tpu.memory_space<vmem>>) attributes {dimension_semantics = [#tpu.dimension_semantics<parallel>, #tpu.dimension_semantics<arbitrary>], iteration_bounds = array<i64: 1, 1>, scalar_prefetch = 0 : i64, scratch_operands = 0 : i64, tpu.core_type = #tpu.core_type<tc>, window_params = [{transform_indices = @transform_0, window_bounds = array<i64: 16, 128>}, {transform_indices = @transform_1, window_bounds = array<i64: 16, 128>}, {transform_indices = @transform_2, window_bounds = array<i64: 1, 8, 128>}, {transform_indices = @transform_3, window_bounds = array<i64: 1, 8, 128>}]} {
    %c0_i32 = arith.constant 0 : i32
    %0 = arith.cmpi eq, %arg1, %c0_i32 : i32
    %1 = arith.extui %0 : i1 to i32
    %c0_i32_0 = arith.constant 0 : i32
    %2 = arith.cmpi ne, %1, %c0_i32_0 : i32
    scf.if %2 {
      %cst_17 = arith.constant 0.000000e+00 : f32
      %23 = vector.broadcast %cst_17 : f32 to vector<8x128xf32>
      %c0_18 = arith.constant 0 : index
      %c0_19 = arith.constant 0 : index
      %c0_20 = arith.constant 0 : index
      %24 = vector.load %arg4[%c0_18, %c0_19, %c0_20] : memref<1x8x128xf32, #tpu.memory_space<vmem>>, vector<1x8x128xf32>
      %25 = vector.shape_cast %24 : vector<1x8x128xf32> to vector<8x128xf32>
      %26 = vector.shape_cast %23 : vector<8x128xf32> to vector<1x8x128xf32>
      tpu.vector_store %arg4[%c0_18, %c0_19, %c0_20], %26 {strides = array<i32>} : memref<1x8x128xf32, #tpu.memory_space<vmem>>, vector<1x8x128xf32>,
      %cst_21 = arith.constant 0.000000e+00 : f32
      %27 = vector.broadcast %cst_21 : f32 to vector<8x128xf32>
      %c0_22 = arith.constant 0 : index
      %c0_23 = arith.constant 0 : index
      %c0_24 = arith.constant 0 : index
      %28 = vector.load %arg5[%c0_22, %c0_23, %c0_24] : memref<1x8x128xf32, #tpu.memory_space<vmem>>, vector<1x8x128xf32>
      %29 = vector.shape_cast %28 : vector<1x8x128xf32> to vector<8x128xf32>
      %30 = vector.shape_cast %27 : vector<8x128xf32> to vector<1x8x128xf32>
      tpu.vector_store %arg5[%c0_22, %c0_23, %c0_24], %30 {strides = array<i32>} : memref<1x8x128xf32, #tpu.memory_space<vmem>>, vector<1x8x128xf32>,
    } else {
    }
    %c0 = arith.constant 0 : index
    %c0_1 = arith.constant 0 : index
    %3 = vector.load %arg2[%c0, %c0_1] : memref<16x128xf32, #tpu.memory_space<vmem>>, vector<16x128xf32>
    %c0_2 = arith.constant 0 : index
    %c0_3 = arith.constant 0 : index
    %4 = vector.load %arg3[%c0_2, %c0_3] : memref<16x128xf32, #tpu.memory_space<vmem>>, vector<16x128xf32>
    %5 = arith.mulf %3, %4 : vector<16x128xf32>
    %6 = arith.addf %3, %4 : vector<16x128xf32>
    %7 = vector.shape_cast %5 : vector<16x128xf32> to vector<2x8x128xf32>
    %cst = arith.constant dense<0.000000e+00> : vector<8x128xf32>
    %8 = vector.multi_reduction <add>, %7, %cst [0] : vector<2x8x128xf32> to vector<8x128xf32>
    %9 = vector.shape_cast %6 : vector<16x128xf32> to vector<2x8x128xf32>
    %cst_4 = arith.constant dense<0.000000e+00> : vector<8x128xf32>
    %10 = vector.multi_reduction <add>, %9, %cst_4 [0] : vector<2x8x128xf32> to vector<8x128xf32>
    %c0_5 = arith.constant 0 : index
    %c0_6 = arith.constant 0 : index
    %c0_7 = arith.constant 0 : index
    %11 = vector.load %arg4[%c0_5, %c0_6, %c0_7] : memref<1x8x128xf32, #tpu.memory_space<vmem>>, vector<1x8x128xf32>
    %12 = vector.shape_cast %11 : vector<1x8x128xf32> to vector<8x128xf32>
    %13 = arith.addf %12, %8 : vector<8x128xf32>
    %c0_8 = arith.constant 0 : index
    %c0_9 = arith.constant 0 : index
    %c0_10 = arith.constant 0 : index
    %14 = vector.load %arg4[%c0_8, %c0_9, %c0_10] : memref<1x8x128xf32, #tpu.memory_space<vmem>>, vector<1x8x128xf32>
    %15 = vector.shape_cast %14 : vector<1x8x128xf32> to vector<8x128xf32>
    %16 = vector.shape_cast %13 : vector<8x128xf32> to vector<1x8x128xf32>
    tpu.vector_store %arg4[%c0_8, %c0_9, %c0_10], %16 {strides = array<i32>} : memref<1x8x128xf32, #tpu.memory_space<vmem>>, vector<1x8x128xf32>,
    %c0_11 = arith.constant 0 : index
    %c0_12 = arith.constant 0 : index
    %c0_13 = arith.constant 0 : index
    %17 = vector.load %arg5[%c0_11, %c0_12, %c0_13] : memref<1x8x128xf32, #tpu.memory_space<vmem>>, vector<1x8x128xf32>
    %18 = vector.shape_cast %17 : vector<1x8x128xf32> to vector<8x128xf32>
    %19 = arith.addf %18, %10 : vector<8x128xf32>
    %c0_14 = arith.constant 0 : index
    %c0_15 = arith.constant 0 : index
    %c0_16 = arith.constant 0 : index
    %20 = vector.load %arg5[%c0_14, %c0_15, %c0_16] : memref<1x8x128xf32, #tpu.memory_space<vmem>>, vector<1x8x128xf32>
    %21 = vector.shape_cast %20 : vector<1x8x128xf32> to vector<8x128xf32>
    %22 = vector.shape_cast %19 : vector<8x128xf32> to vector<1x8x128xf32>
    tpu.vector_store %arg5[%c0_14, %c0_15, %c0_16], %22 {strides = array<i32>} : memref<1x8x128xf32, #tpu.memory_space<vmem>>, vector<1x8x128xf32>,
    return
  }
  func.func @transform_0(%arg0: i32, %arg1: i32) -> (i32, i32) {
    %c1_i32 = arith.constant 1 : i32
    %0 = arith.muli %arg0, %c1_i32 : i32
    %1 = arith.addi %0, %arg1 : i32
    %c0_i32 = arith.constant 0 : i32
    %c0_i32_0 = arith.constant 0 : i32
    return %1, %c0_i32 : i32, i32
  }
  func.func @transform_1(%arg0: i32, %arg1: i32) -> (i32, i32) {
    %c1_i32 = arith.constant 1 : i32
    %0 = arith.muli %arg0, %c1_i32 : i32
    %1 = arith.addi %0, %arg1 : i32
    %c0_i32 = arith.constant 0 : i32
    %c0_i32_0 = arith.constant 0 : i32
    return %1, %c0_i32 : i32, i32
  }
  func.func @transform_2(%arg0: i32, %arg1: i32) -> (i32, i32, i32) {
    %c0_i32 = arith.constant 0 : i32
    %c0_i32_0 = arith.constant 0 : i32
    %c0_i32_1 = arith.constant 0 : i32
    return %arg0, %c0_i32, %c0_i32_0 : i32, i32, i32
  }
  func.func @transform_3(%arg0: i32, %arg1: i32) -> (i32, i32, i32) {
    %c0_i32 = arith.constant 0 : i32
    %c0_i32_0 = arith.constant 0 : i32
    %c0_i32_1 = arith.constant 0 : i32
    return %arg0, %c0_i32, %c0_i32_0 : i32, i32, i32
  }
}

</mosaic_0001>

<llo_original>
// kernel: tpu_custom_call.1
$region0: #{tpu_custom_call.1}
  #allocation0 [shape = 'u32[]', space=smem, size = 0x4, offset = 0x4, fixed_abs, tag = 'smem constant byte address 0x4 - core index']
  #allocation1 [shape = 'u32[144,128]{1,0:T(1,128)}', space=vmem, size = 0x12000, scoped, tag = 'internal scratch']
  %s0 = inlined_call_operand.hbm [shape: f32[16,128], index: 0, kind: input, shape index: {}]
  %s1 = inlined_call_operand.hbm [shape: f32[16,128], index: 1, kind: input, shape index: {}]
  %s2 = inlined_call_operand.hbm [shape: f32[1,8,128], index: 2, kind: output, shape index: {0}]
  %s3 = inlined_call_operand.hbm [shape: f32[1,8,128], index: 3, kind: output, shape index: {1}]
  %4 = xla_tuple %s2, %s3
  %s5 = sld [smem:[#allocation0]]
  $region38: #{tpu_custom_call.1} parent=0
    _
  %s7 = ssub.s32 1, %s5
  %s8 = scalar_select 0, %s7, %s5
  $region1: #{tpu_custom_call.1} parent=0
    #allocation2 [shape = 'u8[8192]{0}', space=vmem, size = 0x2000, scoped, tag = 'input window, operand 0, single buffered']
    #allocation3 [shape = 's32[1]{0}', space=sflag, size = 0x4, scoped, tag = 'scoped memory for tpu_custom_call.1']
    #allocation4 [shape = 's32[1]{0}', space=sflag, size = 0x4, scoped, tag = 'scoped memory for tpu_custom_call.1']
    #allocation5 [shape = 'u8[8192]{0}', space=vmem, size = 0x2000, scoped, tag = 'input window, operand 1, single buffered']
    #allocation6 [shape = 's32[1]{0}', space=sflag, size = 0x4, scoped, tag = 'scoped memory for tpu_custom_call.1']
    #allocation7 [shape = 'u8[4096]{0}', space=vmem, size = 0x1000, scoped, tag = 'output window, operand 0, single buffered']
    #allocation8 [shape = 'u8[4096]{0}', space=vmem, size = 0x1000, scoped, tag = 'output window, operand 1, single buffered']
    #allocation9 [shape = 's32[1]{0}', space=sflag, size = 0x4, scoped, tag = 'scoped memory for tpu_custom_call.1']
    %9 = vsyncpa [#allocation3], 0
    %10 = vsyncpa [#allocation6], 0
    %11 = vsyncpa [#allocation4], 0
    %12 = vsyncpa [#allocation9], 0
    // Predicated region
    $region2: #{tpu_custom_call.1} parent=1 // pred_check
      _
    $region3: #{tpu_custom_call.1} parent=1 // pred_check_branch
      %14 = sbr.rel (0) target = $region5
    $region4: #{tpu_custom_call.1} parent=1 // pred_region
      %s15 = sadd.s32 0, 0
      %s16 = smul.u32 2, %s15
      %s18 = ssub.s32 256, 256
      %19 = vsyncadd [#allocation3], %s18
      %s20 = smul.addr %s16, 128
      %s21 = scalar_lea.hbm %s0, %s20
      %s22 = sshll.u32 [#allocation2], 4
      %s23 = int_to_ptr.vmem [resolvable:$true] %s22
      %28 = dma.hbm_to_vmem [thread:$0]  %s21, 256, %s23, [#allocation3], 128, 128, 8
    $region5: #{tpu_custom_call.1} parent=1 // pred_fallthru
      _
    // Predicated region
    $region6: #{tpu_custom_call.1} parent=1 // pred_check
      _
    $region7: #{tpu_custom_call.1} parent=1 // pred_check_branch
      %30 = sbr.rel (0) target = $region9
    $region8: #{tpu_custom_call.1} parent=1 // pred_region
      %s31 = sadd.s32 0, 0
      %s32 = smul.u32 2, %s31
      %s34 = ssub.s32 256, 256
      %35 = vsyncadd [#allocation6], %s34
      %s36 = smul.addr %s32, 128
      %s37 = scalar_lea.hbm %s1, %s36
      %s38 = sshll.u32 [#allocation5], 4
      %s39 = int_to_ptr.vmem [resolvable:$true] %s38
      %44 = dma.hbm_to_vmem [thread:$0]  %s37, 256, %s39, [#allocation6], 128, 128, 8
    $region9: #{tpu_custom_call.1} parent=1 // pred_fallthru
      _
    // Predicated region
    $region10: #{tpu_custom_call.1} parent=1 // pred_check
      _
    $region11: #{tpu_custom_call.1} parent=1 // pred_check_branch
      %46 = sbr.rel (0) target = $region13
    $region12: #{tpu_custom_call.1} parent=1 // pred_region
      %47 = dma.done [#allocation3], 256
    $region13: #{tpu_custom_call.1} parent=1 // pred_fallthru
      _
    // Predicated region
    $region14: #{tpu_custom_call.1} parent=1 // pred_check
      _
    $region15: #{tpu_custom_call.1} parent=1 // pred_check_branch
      %49 = sbr.rel (0) target = $region17
    $region16: #{tpu_custom_call.1} parent=1 // pred_region
      %50 = dma.done [#allocation6], 256
    $region17: #{tpu_custom_call.1} parent=1 // pred_fallthru
      _
    %s51 = sadd.s32 0, 0
    %s52 = smul.u32 2, %s51
    %s53 = sadd.s32 0, 0
    %s54 = smul.u32 2, %s53
    %p55 = scmp.eq.s32.totalorder 0, 0
    // Predicated region
    $region18: #{tpu_custom_call.1} parent=1 // pred_check
      %p56 = pneg %p55
    $region19: #{tpu_custom_call.1} parent=1 // pred_check_branch
      %58 = sbr.rel (%p56) target = $region21
    $region20: #{tpu_custom_call.1} parent=1 // pred_region
      %59 = vst [vmem:[#allocation7] sm:$0xff] 0.0
      %60 = vst [vmem:[#allocation8] sm:$0xff] 0.0
    $region21: #{tpu_custom_call.1} parent=1 // pred_fallthru
      _
    %v61 = vld [vmem:[#allocation2] sm:$0xff]
    %v62 = vld [vmem:[#allocation2 + $0x8] sm:$0xff]
    %v63 = vld [vmem:[#allocation5] sm:$0xff]
    %v64 = vld [vmem:[#allocation5 + $0x8] sm:$0xff]
    %v65 = vmul.f32 %v61, %v63
    %v66 = vmul.f32 %v62, %v64
    %v67 = vadd.f32 %v61, %v63
    %v68 = vadd.f32 %v62, %v64
    %v69 = vadd.f32 %v65, %v66
    %v70 = vadd.f32 %v67, %v68
    %v71 = vld [vmem:[#allocation7] sm:$0xff]
    %v72 = vadd.f32 %v71, %v69
    %73 = vst [vmem:[#allocation7] sm:$0xff] %v72
    %v74 = vld [vmem:[#allocation8] sm:$0xff]
    %v75 = vadd.f32 %v74, %v70
    %76 = vst [vmem:[#allocation8] sm:$0xff] %v75
    // Predicated region
    $region22: #{tpu_custom_call.1} parent=1 // pred_check
      _
    $region23: #{tpu_custom_call.1} parent=1 // pred_check_branch
      %78 = sbr.rel (0) target = $region25
    $region24: #{tpu_custom_call.1} parent=1 // pred_region
      %s80 = ssub.s32 128, 128
      %81 = vsyncadd [#allocation4], %s80
      %s83 = sshll.u32 [#allocation7], 4
      %s84 = int_to_ptr.vmem [resolvable:$true] %s83
      %86 = dma.vmem_to_hbm [thread:$0]  %s84, 128, %s2, [#allocation4]
    $region25: #{tpu_custom_call.1} parent=1 // pred_fallthru
      _
    // Predicated region
    $region26: #{tpu_custom_call.1} parent=1 // pred_check
      _
    $region27: #{tpu_custom_call.1} parent=1 // pred_check_branch
      %88 = sbr.rel (0) target = $region29
    $region28: #{tpu_custom_call.1} parent=1 // pred_region
      %s90 = ssub.s32 128, 128
      %91 = vsyncadd [#allocation9], %s90
      %s93 = sshll.u32 [#allocation8], 4
      %s94 = int_to_ptr.vmem [resolvable:$true] %s93
      %96 = dma.vmem_to_hbm [thread:$0]  %s94, 128, %s3, [#allocation9]
    $region29: #{tpu_custom_call.1} parent=1 // pred_fallthru
      _
    // Predicated region
    $region30: #{tpu_custom_call.1} parent=1 // pred_check
      _
    $region31: #{tpu_custom_call.1} parent=1 // pred_check_branch
      %98 = sbr.rel (0) target = $region33
    $region32: #{tpu_custom_call.1} parent=1 // pred_region
      %99 = dma.done [#allocation4], 128
    $region33: #{tpu_custom_call.1} parent=1 // pred_fallthru
      _
    // Predicated region
    $region34: #{tpu_custom_call.1} parent=1 // pred_check
      _
    $region35: #{tpu_custom_call.1} parent=1 // pred_check_branch
      %101 = sbr.rel (0) target = $region37
    $region36: #{tpu_custom_call.1} parent=1 // pred_region
      %102 = dma.done [#allocation9], 128
    $region37: #{tpu_custom_call.1} parent=1 // pred_fallthru
      _
    %103 = vsyncpa [#allocation3], 1
    %104 = vsyncpa [#allocation6], 1
    %105 = vsyncpa [#allocation4], 1
    %106 = vsyncpa [#allocation9], 1

</llo_original>
